<compile_context>
chip_gen: v6e
topology: v6e:2x2x1
jax: 0.10.0
libtpu: 0.0.40
codegen_flags: <defaults>
</compile_context>

<pallas_src>
import jax
import jax.numpy as jnp
from jax import lax
from jax.experimental import pallas as pl
from jax.experimental.pallas import tpu as pltpu


# ---------------------------------------------------------------------------
# Pallas kernel: one lane-dense GEMM + folded-BN bias + ReLU per grid step
# ---------------------------------------------------------------------------
def _make_gemm_bias_relu_kernel(nb, howo, relu):
    def kernel(p_ref, w_ref, b_ref, o_ref):
        # p_ref: (kkc, nb*howo)   transposed-im2col patches (positions on lanes)
        # w_ref: (cout, kkc)      conv weights with BN scale pre-folded
        # b_ref: (cout, 1)        folded BN bias (f32)
        # o_ref: (nb, cout, howo) lane-dense output block (NC(HW) layout)
        #
        # Single MXU push, contraction = k*k*Cin; result (cout, nb*howo) is
        # lane-dense, accumulated in f32 -- no transpose, no per-(kh,kw) chain.
        y = jnp.dot(w_ref[...], p_ref[...], preferred_element_type=jnp.float32)
        y = y + b_ref[...]                   # BN bias (scale already in weights)
        if relu:
            y = jnp.maximum(y, 0.0)
        y = y.astype(o_ref.dtype)
        # Per-image stores stay lane-dense (howo lanes); the lane slice of `y`
        # is vreg-granular whenever howo % 128 == 0.
        for b in range(nb):
            o_ref[b] = y[:, b * howo:(b + 1) * howo]
    return kernel


def _pick_images_per_step(n, bytes_per_image, howo, budget):
    """Images folded into one grid step (whole batch if it fits the budget)."""
    if n * bytes_per_image <= budget:
        return n                       # single step: no per-step loop overhead
    for nb in range(n - 1, 0, -1):     # chunk the batch -> parallel grid axis
        if (n % nb == 0 and nb * bytes_per_image <= budget
                and (nb * howo) % 128 == 0):
            return nb
    return n                           # correctness fallback (one big step)


# ---------------------------------------------------------------------------
# Wrapper
# ---------------------------------------------------------------------------
def basic_conv(x_nchw, weight, gamma, beta, running_mean, running_var,
               *, kernel_size, stride=1, padding=0, dilation=1, groups=1,
               eps=1e-5, relu=True, bn=True, compute_dtype=jnp.float32):
    """BasicConv forward.  x_nchw: (N, Cin, H, W); weight: (Cout, Cin, k, k)."""
    cout, cin_w, k, k2 = weight.shape
    assert k == k2 == kernel_size, "kernel_size must match weight shape"
    assert groups == 1, "groups > 1 not supported"  # TODO(synk): grouped conv
    n, cin, h, w = x_nchw.shape
    assert cin == cin_w

    hp, wp = h + 2 * padding, w + 2 * padding
    ho = (hp - dilation * (k - 1) - 1) // stride + 1
    wo = (wp - dilation * (k - 1) - 1) // stride + 1
    howo = ho * wo
    kkc = k * k * cin

    # ---- wrapper glue: transposed im2col (k*k*Cin, N*Ho*Wo) ----------------
    x = x_nchw.astype(compute_dtype)
    x_pad = jnp.pad(x, ((0, 0), (0, 0), (padding, padding), (padding, padding)))
    span_h = (ho - 1) * stride + 1
    span_w = (wo - 1) * stride + 1
    windows = []
    for kh in range(k):
        for kw in range(k):
            windows.append(
                x_pad[:, :, kh * dilation: kh * dilation + span_h: stride,
                            kw * dilation: kw * dilation + span_w: stride])
    patches = jnp.stack(windows, axis=0)          # (k*k, N, Cin, Ho, Wo)
    patches = patches.transpose(0, 2, 1, 3, 4)    # (k*k, Cin, N, Ho, Wo)
    patches = patches.reshape(kkc, n * howo)      # contraction dim x lane dim

    # ---- weights: (Cout, Cin, kh, kw) -> (Cout, k*k*Cin), fold BN scale ----
    w2d = jnp.transpose(weight, (0, 2, 3, 1)).reshape(cout, kkc)
    if bn:
        scale = (gamma / jnp.sqrt(running_var + eps)).astype(jnp.float32)
        bias = (beta - running_mean * scale).astype(jnp.float32)
    else:
        scale = jnp.ones((cout,), jnp.float32)
        bias = jnp.zeros((cout,), jnp.float32)
    w2d = (w2d.astype(jnp.float32) * scale[:, None]).astype(compute_dtype)
    bias = bias.reshape(cout, 1)

    # ---- batch chunking + VMEM budget --------------------------------------
    elt = jnp.dtype(compute_dtype).itemsize
    per_image = 2 * (kkc * howo * elt) + 2 * (cout * howo * 4)  # dbl-buffered
    nb = _pick_images_per_step(n, per_image, howo, budget=16 << 20)
    grid = (n // nb,)

    per_step = nb * per_image + cout * kkc * elt + cout * 4
    vmem_limit = int(min(max(2 * per_step, 8 << 20), 48 << 20))

    flops = 2 * n * howo * kkc * cout
    bytes_accessed = int(patches.size * elt + w2d.size * elt
                         + bias.size * 4 + n * cout * howo * 4)

    kernel = _make_gemm_bias_relu_kernel(nb, howo, relu)

    out_flat = pl.pallas_call(
        kernel,
        out_shape=jax.ShapeDtypeStruct((n, cout, howo), jnp.float32),
        grid_spec=pltpu.PrefetchScalarGridSpec(
            num_scalar_prefetch=0,
            grid=grid,
            in_specs=[
                pl.BlockSpec((kkc, nb * howo), lambda i: (0, i)),
                pl.BlockSpec((cout, kkc), lambda i: (0, 0)),
                pl.BlockSpec((cout, 1), lambda i: (0, 0)),
            ],
            out_specs=pl.BlockSpec((nb, cout, howo), lambda i: (i, 0, 0)),
        ),
        compiler_params=pltpu.CompilerParams(
            dimension_semantics=(("parallel",) if grid[0] > 1
                                 else ("arbitrary",)),
            vmem_limit_bytes=vmem_limit),
        cost_estimate=pl.CostEstimate(flops=flops, transcendentals=0,
                                      bytes_accessed=bytes_accessed),
    )(patches, w2d, bias)

    # (N, Cout, Ho*Wo) -> (N, Cout, Ho, Wo): contiguous reshape, free (NCHW).
    return out_flat.reshape(n, cout, ho, wo)


# ---------------------------------------------------------------------------
# Reference (pure JAX) for verification
# ---------------------------------------------------------------------------
def basic_conv_ref(x_nchw, weight, gamma, beta, running_mean, running_var,
                   *, stride=1, padding=0, dilation=1, eps=1e-5):
    y = lax.conv_general_dilated(
        x_nchw, weight, window_strides=(stride, stride),
        padding=[(padding, padding), (padding, padding)],
        rhs_dilation=(dilation, dilation),
        dimension_numbers=("NCHW", "OIHW", "NCHW"))
    scale = gamma / jnp.sqrt(running_var + eps)
    bias = beta - running_mean * scale
    y = y * scale[None, :, None, None] + bias[None, :, None, None]
    return jnp.maximum(y, 0.0)


if __name__ == "__main__":
    # BasicConv(in_planes=4, out_planes=8, kernel_size=3, stride=1, padding=1)
    N, Cin, H, W = 2, 4, 16, 16
    Cout, K = 8, 3

    key = jax.random.PRNGKey(0)
    kx, kwt, kg, kb = jax.random.split(key, 4)
    x = jax.random.normal(kx, (N, Cin, H, W), dtype=jnp.float32)
    weight = jax.random.normal(kwt, (Cout, Cin, K, K), dtype=jnp.float32) * 0.1
    gamma = 1.0 + 0.1 * jax.random.normal(kg, (Cout,), dtype=jnp.float32)
    beta = 0.1 * jax.random.normal(kb, (Cout,), dtype=jnp.float32)
    running_mean = jnp.zeros((Cout,), dtype=jnp.float32)
    running_var = jnp.ones((Cout,), dtype=jnp.float32)

    # Main config: k=3, stride=1, padding=1 (same as original test).
    out = basic_conv(x, weight, gamma, beta, running_mean, running_var,
                     kernel_size=K, stride=1, padding=1)
    out = jax.block_until_ready(out)
    ref = basic_conv_ref(x, weight, gamma, beta, running_mean, running_var,
                         stride=1, padding=1)
    assert out.shape == (N, Cout, H, W), out.shape
    assert jnp.allclose(out, ref, atol=1e-4, rtol=1e-4), \
        float(jnp.max(jnp.abs(out - ref)))

    # Strided config: k=3, stride=2, padding=1 (covers the strided path).
    out_s = basic_conv(x, weight, gamma, beta, running_mean, running_var,
                       kernel_size=K, stride=2, padding=1)
    out_s = jax.block_until_ready(out_s)
    ref_s = basic_conv_ref(x, weight, gamma, beta, running_mean, running_var,
                           stride=2, padding=1)
    assert out_s.shape == ref_s.shape, (out_s.shape, ref_s.shape)
    assert jnp.allclose(out_s, ref_s, atol=1e-4, rtol=1e-4), \
        float(jnp.max(jnp.abs(out_s - ref_s)))

    print("KERNEL_OK")
</pallas_src>

<mosaic_0001>
module attributes {stable_mosaic.version = 11 : i64} {
  func.func @kernel(%arg0: i32, %arg1: memref<36x512xf32, #tpu.memory_space<vmem>>, %arg2: memref<8x36xf32, #tpu.memory_space<vmem>>, %arg3: memref<8x1xf32, #tpu.memory_space<vmem>>, %arg4: memref<2x8x256xf32, #tpu.memory_space<vmem>>) attributes {dimension_semantics = [#tpu.dimension_semantics<arbitrary>], iteration_bounds = array<i64: 1>, scalar_prefetch = 0 : i64, scratch_operands = 0 : i64, tpu.core_type = #tpu.core_type<tc>, window_params = [{transform_indices = @transform_0, window_bounds = array<i64: 36, 512>}, {pipeline_mode = #tpu.pipeline_mode<synchronous>, transform_indices = @transform_1, window_bounds = array<i64: 8, 36>}, {pipeline_mode = #tpu.pipeline_mode<synchronous>, transform_indices = @transform_2, window_bounds = array<i64: 8, 1>}, {transform_indices = @transform_3, window_bounds = array<i64: 2, 8, 256>}]} {
    %c0 = arith.constant 0 : index
    %c0_0 = arith.constant 0 : index
    %0 = vector.load %arg2[%c0, %c0_0] : memref<8x36xf32, #tpu.memory_space<vmem>>, vector<8x36xf32>
    %c0_1 = arith.constant 0 : index
    %c0_2 = arith.constant 0 : index
    %1 = vector.load %arg1[%c0_1, %c0_2] : memref<36x512xf32, #tpu.memory_space<vmem>>, vector<36x512xf32>
    %cst = arith.constant dense<0.000000e+00> : vector<8x512xf32>
    %2 = tpu.matmul %0, %1, %cst {dimension_numbers = #tpu.dot_dimension_numbers<[1], [0], [0], [1], [0, 0, 1, 1], [], []>} : vector<8x36xf32>, vector<36x512xf32>, vector<8x512xf32> -> vector<8x512xf32>
    %c0_3 = arith.constant 0 : index
    %c0_4 = arith.constant 0 : index
    %3 = vector.load %arg3[%c0_3, %c0_4] : memref<8x1xf32, #tpu.memory_space<vmem>>, vector<8x1xf32>
    %4 = vector.broadcast %3 : vector<8x1xf32> to vector<8x512xf32>
    %5 = arith.addf %2, %4 : vector<8x512xf32>
    %cst_5 = arith.constant 0.000000e+00 : f32
    %6 = vector.broadcast %cst_5 : f32 to vector<8x512xf32>
    %7 = arith.maximumf %5, %6 : vector<8x512xf32>
    %8 = vector.extract_strided_slice %7 {offsets = [0, 0], sizes = [8, 256], strides = [1, 1]} : vector<8x512xf32> to vector<8x256xf32>
    %c0_6 = arith.constant 0 : index
    %c0_7 = arith.constant 0 : index
    %c0_8 = arith.constant 0 : index
    %9 = vector.load %arg4[%c0_6, %c0_7, %c0_8] : memref<2x8x256xf32, #tpu.memory_space<vmem>>, vector<1x8x256xf32>
    %10 = vector.shape_cast %9 : vector<1x8x256xf32> to vector<8x256xf32>
    %11 = vector.shape_cast %8 : vector<8x256xf32> to vector<1x8x256xf32>
    tpu.vector_store %arg4[%c0_6, %c0_7, %c0_8], %11 {strides = array<i32>} : memref<2x8x256xf32, #tpu.memory_space<vmem>>, vector<1x8x256xf32>,
    %12 = vector.extract_strided_slice %7 {offsets = [0, 256], sizes = [8, 256], strides = [1, 1]} : vector<8x512xf32> to vector<8x256xf32>
    %c1 = arith.constant 1 : index
    %c0_9 = arith.constant 0 : index
    %c0_10 = arith.constant 0 : index
    %13 = vector.load %arg4[%c1, %c0_9, %c0_10] : memref<2x8x256xf32, #tpu.memory_space<vmem>>, vector<1x8x256xf32>
    %14 = vector.shape_cast %13 : vector<1x8x256xf32> to vector<8x256xf32>
    %15 = vector.shape_cast %12 : vector<8x256xf32> to vector<1x8x256xf32>
    tpu.vector_store %arg4[%c1, %c0_9, %c0_10], %15 {strides = array<i32>} : memref<2x8x256xf32, #tpu.memory_space<vmem>>, vector<1x8x256xf32>,
    return
  }
  func.func @transform_0(%arg0: i32) -> (i32, i32) {
    %c0_i32 = arith.constant 0 : i32
    %c0_i32_0 = arith.constant 0 : i32
    return %c0_i32, %arg0 : i32, i32
  }
  func.func @transform_1(%arg0: i32) -> (i32, i32) {
    %c0_i32 = arith.constant 0 : i32
    %c0_i32_0 = arith.constant 0 : i32
    %c0_i32_1 = arith.constant 0 : i32
    return %c0_i32, %c0_i32_0 : i32, i32
  }
  func.func @transform_2(%arg0: i32) -> (i32, i32) {
    %c0_i32 = arith.constant 0 : i32
    %c0_i32_0 = arith.constant 0 : i32
    %c0_i32_1 = arith.constant 0 : i32
    return %c0_i32, %c0_i32_0 : i32, i32
  }
  func.func @transform_3(%arg0: i32) -> (i32, i32, i32) {
    %c0_i32 = arith.constant 0 : i32
    %c0_i32_0 = arith.constant 0 : i32
    %c0_i32_1 = arith.constant 0 : i32
    return %arg0, %c0_i32, %c0_i32_0 : i32, i32, i32
  }
}

</mosaic_0001>

<llo_original>
// kernel: tpu_custom_call.1
$region0: #{tpu_custom_call.1}
  #allocation0 [shape = 'u32[]', space=smem, size = 0x4, offset = 0x4, fixed_abs, tag = 'smem constant byte address 0x4 - core index']
  #allocation1 [shape = 'u32[144,128]{1,0:T(1,128)}', space=vmem, size = 0x12000, scoped, tag = 'internal scratch']
  %s0 = inlined_call_operand.hbm [shape: f32[36,512], index: 0, kind: input, shape index: {}]
  %s1 = inlined_call_operand.vmem [shape: f32[8,36], index: 1, kind: input, shape index: {}]
  %s2 = inlined_call_operand.vmem [shape: f32[8,1], index: 2, kind: input, shape index: {}]
  %s3 = inlined_call_operand.hbm [shape: f32[2,8,256], index: 3, kind: output, shape index: {}]
  %s4 = sld [smem:[#allocation0]]
  $region26: #{tpu_custom_call.1} parent=0
    _
  %s6 = ssub.s32 1, %s4
  %s7 = scalar_select 0, %s6, %s4
  $region1: #{tpu_custom_call.1} parent=0
    #allocation2 [shape = 'u8[81920]{0}', space=vmem, size = 0x14000, scoped, tag = 'input window, operand 0, single buffered']
    #allocation3 [shape = 's32[1]{0}', space=sflag, size = 0x4, scoped, tag = 'scoped memory for tpu_custom_call.1']
    #allocation4 [shape = 's32[1]{0}', space=sflag, size = 0x4, scoped, tag = 'scoped memory for tpu_custom_call.1']
    #allocation5 [shape = 'u8[16384]{0}', space=vmem, size = 0x4000, scoped, tag = 'output window, operand 0, single buffered']
    %8 = vsyncpa [#allocation3], 0
    %9 = vsyncpa [#allocation4], 0
    // Predicated region
    $region2: #{tpu_custom_call.1} parent=1 // pred_check
      _
    $region3: #{tpu_custom_call.1} parent=1 // pred_check_branch
      %11 = sbr.rel (0) target = $region5
    $region4: #{tpu_custom_call.1} parent=1 // pred_region
      %s13 = ssub.s32 2560, 2560
      %14 = vsyncadd [#allocation3], %s13
      %s15 = sshll.u32 [#allocation2], 4
      %s16 = int_to_ptr.vmem [resolvable:$true] %s15
      %21 = dma.hbm_to_vmem [thread:$0]  %s0, 2560, %s16, [#allocation3], 512, 512, 32
    $region5: #{tpu_custom_call.1} parent=1 // pred_fallthru
      _
    // Predicated region
    $region6: #{tpu_custom_call.1} parent=1 // pred_check
      _
    $region7: #{tpu_custom_call.1} parent=1 // pred_check_branch
      %23 = sbr.rel (0) target = $region9
    $region8: #{tpu_custom_call.1} parent=1 // pred_region
      _
    $region9: #{tpu_custom_call.1} parent=1 // pred_fallthru
      _
    // Predicated region
    $region10: #{tpu_custom_call.1} parent=1 // pred_check
      _
    $region11: #{tpu_custom_call.1} parent=1 // pred_check_branch
      %25 = sbr.rel (0) target = $region13
    $region12: #{tpu_custom_call.1} parent=1 // pred_region
      _
    $region13: #{tpu_custom_call.1} parent=1 // pred_fallthru
      _
    // Predicated region
    $region14: #{tpu_custom_call.1} parent=1 // pred_check
      _
    $region15: #{tpu_custom_call.1} parent=1 // pred_check_branch
      %27 = sbr.rel (0) target = $region17
    $region16: #{tpu_custom_call.1} parent=1 // pred_region
      %28 = dma.done [#allocation3], 2560
    $region17: #{tpu_custom_call.1} parent=1 // pred_fallthru
      _
    %v29 = vld [vmem:[%s1] sm:$0xff]
    %v30 = vld [vmem:[#allocation2] sm:$0xff]
    %v31 = vld [vmem:[#allocation2 + $0x8] sm:$0xff]
    %v32 = vld [vmem:[#allocation2 + $0x10] sm:$0xff]
    %v33 = vld [vmem:[#allocation2 + $0x18] sm:$0xff]
    %v34 = vld [vmem:[#allocation2 + $0x20] sm:$0xff]
    %v35 = vld [vmem:[#allocation2 + $0x28] sm:$0xff]
    %v36 = vld [vmem:[#allocation2 + $0x30] sm:$0xff]
    %v37 = vld [vmem:[#allocation2 + $0x38] sm:$0xff]
    %v38 = vld [vmem:[#allocation2 + $0x40] sm:$0xff]
    %v39 = vld [vmem:[#allocation2 + $0x48] sm:$0xff]
    %v40 = vld [vmem:[#allocation2 + $0x50] sm:$0xff]
    %v41 = vld [vmem:[#allocation2 + $0x58] sm:$0xff]
    %v42 = vld [vmem:[#allocation2 + $0x60] sm:$0xff]
    %v43 = vld [vmem:[#allocation2 + $0x68] sm:$0xff]
    %v44 = vld [vmem:[#allocation2 + $0x70] sm:$0xff]
    %v45 = vld [vmem:[#allocation2 + $0x78] sm:$0xff]
    %v46 = vld [vmem:[#allocation2 + $0x80] sm:$0xf]
    %v47 = vld [vmem:[#allocation2 + $0x88] sm:$0xf]
    %v48 = vld [vmem:[#allocation2 + $0x90] sm:$0xf]
    %v49 = vld [vmem:[#allocation2 + $0x98] sm:$0xf]
    %v50 = vld [vmem:[%s2] sm:$0xff]
    %52 = vset.pattern.permute.xlu0 0
    %53 = vperm.xlu0 %52, %v50
    %v54 = vpop.permute.xlu0 %53
    %vm56 = vcmask 293888
    %v58 = vsel %vm56, %v29, 0
    %vm60 = vcmask 1043456
    %v62 = vsel %vm60, %v46, 0
    %v65 = vsel %vm60, %v47, 0
    %v68 = vsel %vm60, %v48, 0
    %v71 = vsel %vm60, %v49, 0
    %73 = vmatprep.subr.mxu0 0.0
    %74 = vmatpush1.msra.mxu0 0.0
    %75 = vmatprep.subr.mxu0 0.0
    %76 = vmatpush1.msra.mxu0 0.0
    %77 = vmatprep.subr.mxu0 0.0
    %78 = vmatpush1.msra.mxu0 0.0
    %79 = vmatprep.subr.mxu0 0.0
    %80 = vmatpush1.msra.mxu0 0.0
    %81 = vmatprep.subr.mxu0 0.0
    %82 = vmatpush1.msra.mxu0 0.0
    %83 = vmatprep.subr.mxu0 0.0
    %84 = vmatpush1.msra.mxu0 0.0
    %85 = vmatprep.subr.mxu0 0.0
    %86 = vmatpush1.msra.mxu0 0.0
    %87 = vmatprep.subr.mxu0 0.0
    %88 = vmatpush1.msra.mxu0 0.0
    %89 = vmatprep.subr.mxu0 0.0
    %90 = vmatpush1.msra.mxu0 0.0
    %91 = vmatprep.subr.mxu0 0.0
    %92 = vmatpush1.msra.mxu0 0.0
    %93 = vmatprep.subr.mxu0 0.0
    %94 = vmatpush1.msra.mxu0 0.0
    %95 = vmatprep.subr.mxu0 %v65
    %96 = vmatpush1.msra.mxu0 %v62
    %97 = vmatprep.subr.mxu0 %v43
    %98 = vmatpush1.msra.mxu0 %v42
    %99 = vmatprep.subr.mxu0 %v39
    %100 = vmatpush1.msra.mxu0 %v38
    %101 = vmatprep.subr.mxu0 %v35
    %102 = vmatpush1.msra.mxu0 %v34
    %103 = vmatprep.subr.mxu0 %v31
    %104 = vmatpush1.msra.mxu0 %v30
    %105 = vmatprep.subr.mxu0 0.0
    %106 = vmatpush2.msra.mxu0 0.0
    %107 = vmatprep.subr.mxu0 0.0
    %108 = vmatpush2.msra.mxu0 0.0
    %109 = vmatprep.subr.mxu0 0.0
    %110 = vmatpush2.msra.mxu0 0.0
    %111 = vmatprep.subr.mxu0 0.0
    %112 = vmatpush2.msra.mxu0 0.0
    %113 = vmatprep.subr.mxu0 0.0
    %114 = vmatpush2.msra.mxu0 0.0
    %115 = vmatprep.subr.mxu0 0.0
    %116 = vmatpush2.msra.mxu0 0.0
    %117 = vmatprep.subr.mxu0 0.0
    %118 = vmatpush2.msra.mxu0 0.0
    %119 = vmatprep.subr.mxu0 0.0
    %120 = vmatpush2.msra.mxu0 0.0
    %121 = vmatprep.subr.mxu0 0.0
    %122 = vmatpush2.msra.mxu0 0.0
    %123 = vmatprep.subr.mxu0 0.0
    %124 = vmatpush2.msra.mxu0 0.0
    %125 = vmatprep.subr.mxu0 0.0
    %126 = vmatpush2.msra.mxu0 0.0
    %127 = vmatprep.subr.mxu0 0.0
    %128 = vmatpush2.msra.mxu0 0.0
    %129 = vmatprep.subr.mxu0 0.0
    %130 = vmatpush2.msra.mxu0 0.0
    %131 = vmatprep.subr.mxu0 0.0
    %132 = vmatpush2.msra.mxu0 0.0
    %133 = vmatprep.subr.mxu0 0.0
    %134 = vmatpush2.msra.mxu0 0.0
    %135 = vmatprep.subr.mxu0 0.0
    %136 = vmatpush2.msra.mxu0 0.0
    %137 = vmatprep.mubr.f32.mxu0 0.0
    %138 = vmatmul.mubr.f32.gmra.mxu0 %v58
    %v139 = vpop.f32.mrf.mxu0
    %v140 = vadd.f32 %v54, %v139
    %v141 = vpop.f32.mrf.mxu0
    %v142 = vadd.f32 %v54, %v141
    %143 = vdwg.mxu0
    %144 = vmatprep.subr.mxu0 0.0
    %145 = vmatpush1.msra.mxu0 0.0
    %146 = vmatprep.subr.mxu0 0.0
    %147 = vmatpush1.msra.mxu0 0.0
    %148 = vmatprep.subr.mxu0 0.0
    %149 = vmatpush1.msra.mxu0 0.0
    %150 = vmatprep.subr.mxu0 0.0
    %151 = vmatpush1.msra.mxu0 0.0
    %152 = vmatprep.subr.mxu0 0.0
    %153 = vmatpush1.msra.mxu0 0.0
    %154 = vmatprep.subr.mxu0 0.0
    %155 = vmatpush1.msra.mxu0 0.0
    %156 = vmatprep.subr.mxu0 0.0
    %157 = vmatpush1.msra.mxu0 0.0
    %158 = vmatprep.subr.mxu0 0.0
    %159 = vmatpush1.msra.mxu0 0.0
    %160 = vmatprep.subr.mxu0 0.0
    %161 = vmatpush1.msra.mxu0 0.0
    %162 = vmatprep.subr.mxu0 0.0
    %163 = vmatpush1.msra.mxu0 0.0
    %164 = vmatprep.subr.mxu0 0.0
    %165 = vmatpush1.msra.mxu0 0.0
    %166 = vmatprep.subr.mxu0 %v71
    %167 = vmatpush1.msra.mxu0 %v68
    %168 = vmatprep.subr.mxu0 %v45
    %169 = vmatpush1.msra.mxu0 %v44
    %170 = vmatprep.subr.mxu0 %v41
    %171 = vmatpush1.msra.mxu0 %v40
    %172 = vmatprep.subr.mxu0 %v37
    %173 = vmatpush1.msra.mxu0 %v36
    %174 = vmatprep.subr.mxu0 %v33
    %175 = vmatpush1.msra.mxu0 %v32
    %176 = vmatprep.subr.mxu0 0.0
    %177 = vmatpush2.msra.mxu0 0.0
    %178 = vmatprep.subr.mxu0 0.0
    %179 = vmatpush2.msra.mxu0 0.0
    %180 = vmatprep.subr.mxu0 0.0
    %181 = vmatpush2.msra.mxu0 0.0
    %182 = vmatprep.subr.mxu0 0.0
    %183 = vmatpush2.msra.mxu0 0.0
    %184 = vmatprep.subr.mxu0 0.0
    %185 = vmatpush2.msra.mxu0 0.0
    %186 = vmatprep.subr.mxu0 0.0
    %187 = vmatpush2.msra.mxu0 0.0
    %188 = vmatprep.subr.mxu0 0.0
    %189 = vmatpush2.msra.mxu0 0.0
    %190 = vmatprep.subr.mxu0 0.0
    %191 = vmatpush2.msra.mxu0 0.0
    %192 = vmatprep.subr.mxu0 0.0
    %193 = vmatpush2.msra.mxu0 0.0
    %194 = vmatprep.subr.mxu0 0.0
    %195 = vmatpush2.msra.mxu0 0.0
    %196 = vmatprep.subr.mxu0 0.0
    %197 = vmatpush2.msra.mxu0 0.0
    %198 = vmatprep.subr.mxu0 0.0
    %199 = vmatpush2.msra.mxu0 0.0
    %200 = vmatprep.subr.mxu0 0.0
    %201 = vmatpush2.msra.mxu0 0.0
    %202 = vmatprep.subr.mxu0 0.0
    %203 = vmatpush2.msra.mxu0 0.0
    %204 = vmatprep.subr.mxu0 0.0
    %205 = vmatpush2.msra.mxu0 0.0
    %206 = vmatprep.subr.mxu0 0.0
    %207 = vmatpush2.msra.mxu0 0.0
    %208 = vmatprep.mubr.f32.mxu0 0.0
    %209 = vmatmul.mubr.f32.gmra.mxu0 %v58
    %v210 = vpop.f32.mrf.mxu0
    %v211 = vadd.f32 %v54, %v210
    %v212 = vpop.f32.mrf.mxu0
    %v213 = vadd.f32 %v54, %v212
    %214 = vdwg.mxu0
    %v215 = vmax.f32 %v140, 0.0
    %v216 = vmax.f32 %v142, 0.0
    %v217 = vmax.f32 %v211, 0.0
    %v218 = vmax.f32 %v213, 0.0
    %219 = vst [vmem:[#allocation5] sm:$0xff] %v215
    %220 = vst [vmem:[#allocation5 + $0x8] sm:$0xff] %v216
    %s221 = scalar_lea.vmem [#allocation5], 16
    %222 = vst [vmem:[%s221] sm:$0xff] %v217
    %223 = vst [vmem:[%s221 + $0x8] sm:$0xff] %v218
    // Predicated region
    $region18: #{tpu_custom_call.1} parent=1 // pred_check
      _
    $region19: #{tpu_custom_call.1} parent=1 // pred_check_branch
      %225 = sbr.rel (0) target = $region21
    $region20: #{tpu_custom_call.1} parent=1 // pred_region
      %s227 = ssub.s32 512, 512
      %228 = vsyncadd [#allocation4], %s227
      %s229 = sshll.u32 [#allocation5], 4
      %s230 = int_to_ptr.vmem [resolvable:$true] %s229
      %235 = dma.vmem_to_hbm [thread:$0]  %s230, 512, %s3, [#allocation4], 256, 256, 16
    $region21: #{tpu_custom_call.1} parent=1 // pred_fallthru
      _
    // Predicated region
    $region22: #{tpu_custom_call.1} parent=1 // pred_check
      _
    $region23: #{tpu_custom_call.1} parent=1 // pred_check_branch
      %237 = sbr.rel (0) target = $region25
    $region24: #{tpu_custom_call.1} parent=1 // pred_region
      %238 = dma.done [#allocation4], 512
    $region25: #{tpu_custom_call.1} parent=1 // pred_fallthru
      _
    %239 = vsyncpa [#allocation3], 1
    %240 = vsyncpa [#allocation4], 1

</llo_original>
